<compile_context>
chip_gen: v7x
topology: tpu7x:2x2x1
jax: 0.10.0
libtpu: 0.0.40
codegen_flags: <defaults>
</compile_context>

<pallas_src>
import jax
import jax.numpy as jnp
from jax import lax
from jax.experimental import pallas as pl
from jax.experimental.pallas import tpu as pltpu

_MAX_UNROLL_STEPS = 32   # full unroll up to this S; fori_loop + VMEM xw beyond
_LANE = 128              # lane-dense output padding target


def _log_softmax_epilogue(acc, wout_t_ref, bout_ref, out_ref):
    # Linear(h -> C_pad) + LogSoftmax over a lane-dense (B, C_pad) slab.
    # Padded columns carry zero weights and a -1e30 bias, so they contribute
    # exp(-huge) == 0 to the sum and never win the max; wrapper slices [:, :C].
    logits = (
        jnp.dot(acc, wout_t_ref[...], preferred_element_type=jnp.float32)
        + bout_ref[...]
    )  # (B, C_pad)
    m = jnp.max(logits, axis=1, keepdims=True)
    shifted = logits - m
    lse = jnp.log(jnp.sum(jnp.exp(shifted), axis=1, keepdims=True))
    out_ref[...] = shifted - lse


def _make_unrolled_kernel(S, B):
    """Fully-unrolled recurrence (small static S): best latency, no scratch."""

    def rnn_kernel(x_ref, wih_t_ref, whh_t_ref, bias_ref, wout_t_ref, bout_ref,
                   out_ref):
        # ---- Prologue (off the serial critical path) ------------------------
        # One MXU pass for the input projection over ALL timesteps, bias folded.
        xw = (
            jnp.dot(x_ref[...], wih_t_ref[...], preferred_element_type=jnp.float32)
            + bias_ref[...]
        )  # (S*B, H)
        whh_t = whh_t_ref[...]  # recurrent weight loaded once, loop-invariant

        # ---- Serial recurrence, fully unrolled (S static) -------------------
        h = jnp.tanh(xw[0:B, :])                      # h_0 = 0 => no Whh matmul
        acc = h
        for t in range(1, S):
            h = jnp.tanh(
                xw[t * B:(t + 1) * B, :]
                + jnp.dot(h, whh_t, preferred_element_type=jnp.float32)
            )
            acc = acc + h

        _log_softmax_epilogue(acc, wout_t_ref, bout_ref, out_ref)

    return rnn_kernel


def _make_looped_kernel(S, B):
    """Scale-ready recurrence: xw kept in VMEM scratch, fori_loop(unroll=4)."""

    def rnn_kernel(x_ref, wih_t_ref, whh_t_ref, bias_ref, wout_t_ref, bout_ref,
                   out_ref, xw_ref):
        # ---- Prologue: hoisted projection written to VMEM scratch -----------
        xw2d = (
            jnp.dot(x_ref[...], wih_t_ref[...], preferred_element_type=jnp.float32)
            + bias_ref[...]
        )  # (S*B, H)
        # Static per-timestep scatter into the (S, B, H) scratch (prologue-only,
        # off the dependent chain); per-step access in the loop is then a cheap
        # leading-axis dynamic index.
        for t in range(S):
            xw_ref[t] = xw2d[t * B:(t + 1) * B, :]

        whh_t = whh_t_ref[...]

        # ---- Serial recurrence with bounded vreg live ranges -----------------
        h0 = jnp.tanh(xw_ref[0])                      # h_0 = 0 shortcut

        def body(t, carry):
            h, acc = carry
            h = jnp.tanh(
                xw_ref[t]
                + jnp.dot(h, whh_t, preferred_element_type=jnp.float32)
            )
            return h, acc + h

        _, acc = lax.fori_loop(1, S, body, (h0, h0), unroll=4)

        _log_softmax_epilogue(acc, wout_t_ref, bout_ref, out_ref)

    return rnn_kernel


def rnn_forward(x, w_ih, w_hh, b_ih, b_hh, w_out, b_out):
    """x: (S, B, D) time-major float32. Returns log-softmax predictions (B, C)."""
    S, B, D = x.shape
    H = w_hh.shape[0]
    C = w_out.shape[0]
    C_pad = ((C + _LANE - 1) // _LANE) * _LANE

    # Layout-only glue (no model compute moved out of the kernel):
    #  dense 2-D time-major input, pre-transposed weights, pre-summed RNN bias,
    #  lane-dense-padded output projection (padded bias = -1e30).
    x2 = x.reshape(S * B, D)                       # rows [t*B:(t+1)*B] = step t
    wih_t = jnp.transpose(w_ih)                    # (D, H)
    whh_t = jnp.transpose(w_hh)                    # (H, H)
    bias = (b_ih + b_hh).reshape(1, H)             # (1, H)
    wout_t = jnp.zeros((H, C_pad), jnp.float32).at[:, :C].set(jnp.transpose(w_out))
    bout = jnp.full((1, C_pad), -1e30, jnp.float32).at[0, :C].set(b_out)

    unrolled = S <= _MAX_UNROLL_STEPS
    kernel = _make_unrolled_kernel(S, B) if unrolled else _make_looped_kernel(S, B)
    scratch = [] if unrolled else [pltpu.VMEM((S, B, H), jnp.float32)]

    full = lambda shape: pl.BlockSpec(shape, lambda: (0,) * len(shape))
    out_pad = pl.pallas_call(
        kernel,
        out_shape=jax.ShapeDtypeStruct((B, C_pad), jnp.float32),
        grid=(),
        in_specs=[
            full((S * B, D)),
            full((D, H)),
            full((H, H)),
            full((1, H)),
            full((H, C_pad)),
            full((1, C_pad)),
        ],
        out_specs=full((B, C_pad)),
        scratch_shapes=scratch,
    )(x2, wih_t, whh_t, bias, wout_t, bout)

    return out_pad[:, :C]


def _reference(x, w_ih, w_hh, b_ih, b_hh, w_out, b_out):
    S, B, D = x.shape
    H = w_hh.shape[0]
    h = jnp.zeros((B, H), jnp.float32)
    acc = jnp.zeros((B, H), jnp.float32)
    for t in range(S):
        h = jnp.tanh(x[t] @ w_ih.T + b_ih + h @ w_hh.T + b_hh)
        acc = acc + h
    logits = acc @ w_out.T + b_out
    return jax.nn.log_softmax(logits, axis=1)


if __name__ == "__main__":
    # Small deterministic setup: seq=8, batch=2, input_dim=16, hidden=32, classes=5
    S, B, D, H, C = 8, 2, 16, 32, 5
    key = jax.random.PRNGKey(0)
    ks = jax.random.split(key, 7)
    bound = 1.0 / jnp.sqrt(H)
    x = jax.random.normal(ks[0], (S, B, D), jnp.float32)
    w_ih = jax.random.uniform(ks[1], (H, D), jnp.float32, -bound, bound)
    w_hh = jax.random.uniform(ks[2], (H, H), jnp.float32, -bound, bound)
    b_ih = jax.random.uniform(ks[3], (H,), jnp.float32, -bound, bound)
    b_hh = jax.random.uniform(ks[4], (H,), jnp.float32, -bound, bound)
    w_out = jax.random.uniform(ks[5], (C, H), jnp.float32, -bound, bound)
    b_out = jax.random.uniform(ks[6], (C,), jnp.float32, -bound, bound)

    # Primary case: fully-unrolled path (S <= 32).
    out = jax.block_until_ready(rnn_forward(x, w_ih, w_hh, b_ih, b_hh, w_out, b_out))
    ref = _reference(x, w_ih, w_hh, b_ih, b_hh, w_out, b_out)
    assert out.shape == (B, C)
    assert jnp.allclose(out, ref, atol=1e-4, rtol=1e-4), "mismatch vs JAX reference (S=8)"

    # Also exercise the scale-ready path (VMEM-resident xw + fori_loop) at S > 32.
    S2 = 48
    x_long = jax.random.normal(jax.random.PRNGKey(1), (S2, B, D), jnp.float32)
    out2 = jax.block_until_ready(rnn_forward(x_long, w_ih, w_hh, b_ih, b_hh, w_out, b_out))
    ref2 = _reference(x_long, w_ih, w_hh, b_ih, b_hh, w_out, b_out)
    assert out2.shape == (B, C)
    assert jnp.allclose(out2, ref2, atol=1e-3, rtol=1e-3), "mismatch vs JAX reference (S=48)"

    print("KERNEL_OK")
</pallas_src>

<mosaic_0001>
module attributes {stable_mosaic.version = 11 : i64} {
  func.func @rnn_kernel(%arg0: memref<16x16xf32, #tpu.memory_space<vmem>>, %arg1: memref<16x32xf32, #tpu.memory_space<vmem>>, %arg2: memref<32x32xf32, #tpu.memory_space<vmem>>, %arg3: memref<1x32xf32, #tpu.memory_space<vmem>>, %arg4: memref<32x128xf32, #tpu.memory_space<vmem>>, %arg5: memref<1x128xf32, #tpu.memory_space<vmem>>, %arg6: memref<2x128xf32, #tpu.memory_space<vmem>>) attributes {dimension_semantics = [], scalar_prefetch = 0 : i64, scratch_operands = 0 : i64, tpu.core_type = #tpu.core_type<tc>} {
    %c0 = arith.constant 0 : index
    %c0_0 = arith.constant 0 : index
    %0 = vector.load %arg0[%c0, %c0_0] : memref<16x16xf32, #tpu.memory_space<vmem>>, vector<16x16xf32>
    %c0_1 = arith.constant 0 : index
    %c0_2 = arith.constant 0 : index
    %1 = vector.load %arg1[%c0_1, %c0_2] : memref<16x32xf32, #tpu.memory_space<vmem>>, vector<16x32xf32>
    %cst = arith.constant dense<0.000000e+00> : vector<16x32xf32>
    %2 = tpu.matmul %0, %1, %cst {dimension_numbers = #tpu.dot_dimension_numbers<[1], [0], [0], [1], [0, 0, 1, 1], [], []>} : vector<16x16xf32>, vector<16x32xf32>, vector<16x32xf32> -> vector<16x32xf32>
    %c0_3 = arith.constant 0 : index
    %c0_4 = arith.constant 0 : index
    %3 = vector.load %arg3[%c0_3, %c0_4] : memref<1x32xf32, #tpu.memory_space<vmem>>, vector<1x32xf32>
    %4 = vector.broadcast %3 : vector<1x32xf32> to vector<16x32xf32>
    %5 = arith.addf %2, %4 : vector<16x32xf32>
    %c0_5 = arith.constant 0 : index
    %c0_6 = arith.constant 0 : index
    %6 = vector.load %arg2[%c0_5, %c0_6] : memref<32x32xf32, #tpu.memory_space<vmem>>, vector<32x32xf32>
    %7 = vector.extract_strided_slice %5 {offsets = [0, 0], sizes = [2, 32], strides = [1, 1]} : vector<16x32xf32> to vector<2x32xf32>
    %8 = math.tanh %7 : vector<2x32xf32>
    %9 = vector.extract_strided_slice %5 {offsets = [2, 0], sizes = [2, 32], strides = [1, 1]} : vector<16x32xf32> to vector<2x32xf32>
    %cst_7 = arith.constant dense<0.000000e+00> : vector<2x32xf32>
    %10 = tpu.matmul %8, %6, %cst_7 {dimension_numbers = #tpu.dot_dimension_numbers<[1], [0], [0], [1], [0, 0, 1, 1], [], []>} : vector<2x32xf32>, vector<32x32xf32>, vector<2x32xf32> -> vector<2x32xf32>
    %11 = arith.addf %9, %10 : vector<2x32xf32>
    %12 = math.tanh %11 : vector<2x32xf32>
    %13 = arith.addf %8, %12 : vector<2x32xf32>
    %14 = vector.extract_strided_slice %5 {offsets = [4, 0], sizes = [2, 32], strides = [1, 1]} : vector<16x32xf32> to vector<2x32xf32>
    %cst_8 = arith.constant dense<0.000000e+00> : vector<2x32xf32>
    %15 = tpu.matmul %12, %6, %cst_8 {dimension_numbers = #tpu.dot_dimension_numbers<[1], [0], [0], [1], [0, 0, 1, 1], [], []>} : vector<2x32xf32>, vector<32x32xf32>, vector<2x32xf32> -> vector<2x32xf32>
    %16 = arith.addf %14, %15 : vector<2x32xf32>
    %17 = math.tanh %16 : vector<2x32xf32>
    %18 = arith.addf %13, %17 : vector<2x32xf32>
    %19 = vector.extract_strided_slice %5 {offsets = [6, 0], sizes = [2, 32], strides = [1, 1]} : vector<16x32xf32> to vector<2x32xf32>
    %cst_9 = arith.constant dense<0.000000e+00> : vector<2x32xf32>
    %20 = tpu.matmul %17, %6, %cst_9 {dimension_numbers = #tpu.dot_dimension_numbers<[1], [0], [0], [1], [0, 0, 1, 1], [], []>} : vector<2x32xf32>, vector<32x32xf32>, vector<2x32xf32> -> vector<2x32xf32>
    %21 = arith.addf %19, %20 : vector<2x32xf32>
    %22 = math.tanh %21 : vector<2x32xf32>
    %23 = arith.addf %18, %22 : vector<2x32xf32>
    %24 = vector.extract_strided_slice %5 {offsets = [8, 0], sizes = [2, 32], strides = [1, 1]} : vector<16x32xf32> to vector<2x32xf32>
    %cst_10 = arith.constant dense<0.000000e+00> : vector<2x32xf32>
    %25 = tpu.matmul %22, %6, %cst_10 {dimension_numbers = #tpu.dot_dimension_numbers<[1], [0], [0], [1], [0, 0, 1, 1], [], []>} : vector<2x32xf32>, vector<32x32xf32>, vector<2x32xf32> -> vector<2x32xf32>
    %26 = arith.addf %24, %25 : vector<2x32xf32>
    %27 = math.tanh %26 : vector<2x32xf32>
    %28 = arith.addf %23, %27 : vector<2x32xf32>
    %29 = vector.extract_strided_slice %5 {offsets = [10, 0], sizes = [2, 32], strides = [1, 1]} : vector<16x32xf32> to vector<2x32xf32>
    %cst_11 = arith.constant dense<0.000000e+00> : vector<2x32xf32>
    %30 = tpu.matmul %27, %6, %cst_11 {dimension_numbers = #tpu.dot_dimension_numbers<[1], [0], [0], [1], [0, 0, 1, 1], [], []>} : vector<2x32xf32>, vector<32x32xf32>, vector<2x32xf32> -> vector<2x32xf32>
    %31 = arith.addf %29, %30 : vector<2x32xf32>
    %32 = math.tanh %31 : vector<2x32xf32>
    %33 = arith.addf %28, %32 : vector<2x32xf32>
    %34 = vector.extract_strided_slice %5 {offsets = [12, 0], sizes = [2, 32], strides = [1, 1]} : vector<16x32xf32> to vector<2x32xf32>
    %cst_12 = arith.constant dense<0.000000e+00> : vector<2x32xf32>
    %35 = tpu.matmul %32, %6, %cst_12 {dimension_numbers = #tpu.dot_dimension_numbers<[1], [0], [0], [1], [0, 0, 1, 1], [], []>} : vector<2x32xf32>, vector<32x32xf32>, vector<2x32xf32> -> vector<2x32xf32>
    %36 = arith.addf %34, %35 : vector<2x32xf32>
    %37 = math.tanh %36 : vector<2x32xf32>
    %38 = arith.addf %33, %37 : vector<2x32xf32>
    %39 = vector.extract_strided_slice %5 {offsets = [14, 0], sizes = [2, 32], strides = [1, 1]} : vector<16x32xf32> to vector<2x32xf32>
    %cst_13 = arith.constant dense<0.000000e+00> : vector<2x32xf32>
    %40 = tpu.matmul %37, %6, %cst_13 {dimension_numbers = #tpu.dot_dimension_numbers<[1], [0], [0], [1], [0, 0, 1, 1], [], []>} : vector<2x32xf32>, vector<32x32xf32>, vector<2x32xf32> -> vector<2x32xf32>
    %41 = arith.addf %39, %40 : vector<2x32xf32>
    %42 = math.tanh %41 : vector<2x32xf32>
    %43 = arith.addf %38, %42 : vector<2x32xf32>
    %c0_14 = arith.constant 0 : index
    %c0_15 = arith.constant 0 : index
    %44 = vector.load %arg4[%c0_14, %c0_15] : memref<32x128xf32, #tpu.memory_space<vmem>>, vector<32x128xf32>
    %cst_16 = arith.constant dense<0.000000e+00> : vector<2x128xf32>
    %45 = tpu.matmul %43, %44, %cst_16 {dimension_numbers = #tpu.dot_dimension_numbers<[1], [0], [0], [1], [0, 0, 1, 1], [], []>} : vector<2x32xf32>, vector<32x128xf32>, vector<2x128xf32> -> vector<2x128xf32>
    %c0_17 = arith.constant 0 : index
    %c0_18 = arith.constant 0 : index
    %46 = vector.load %arg5[%c0_17, %c0_18] : memref<1x128xf32, #tpu.memory_space<vmem>>, vector<1x128xf32>
    %47 = vector.broadcast %46 : vector<1x128xf32> to vector<2x128xf32>
    %48 = arith.addf %45, %47 : vector<2x128xf32>
    %cst_19 = arith.constant dense<0xFF800000> : vector<2xf32>
    %49 = vector.multi_reduction <maximumf>, %48, %cst_19 [1] : vector<2x128xf32> to vector<2xf32>
    %50 = vector.shape_cast %49 : vector<2xf32> to vector<2x1xf32>
    %51 = vector.broadcast %50 : vector<2x1xf32> to vector<2x128xf32>
    %52 = arith.subf %48, %51 : vector<2x128xf32>
    %53 = math.exp %52 : vector<2x128xf32>
    %cst_20 = arith.constant dense<0.000000e+00> : vector<2xf32>
    %54 = vector.multi_reduction <add>, %53, %cst_20 [1] : vector<2x128xf32> to vector<2xf32>
    %55 = vector.shape_cast %54 : vector<2xf32> to vector<2x1xf32>
    %56 = math.log %55 : vector<2x1xf32>
    %57 = vector.broadcast %56 : vector<2x1xf32> to vector<2x128xf32>
    %58 = arith.subf %52, %57 : vector<2x128xf32>
    %c0_21 = arith.constant 0 : index
    %c0_22 = arith.constant 0 : index
    %59 = vector.load %arg6[%c0_21, %c0_22] : memref<2x128xf32, #tpu.memory_space<vmem>>, vector<2x128xf32>
    tpu.vector_store %arg6[%c0_21, %c0_22], %58 {strides = array<i32>} : memref<2x128xf32, #tpu.memory_space<vmem>>, vector<2x128xf32>,
    return
  }
}

</mosaic_0001>

<llo_original>
// kernel: tpu_custom_call.1
$region0: #{tpu_custom_call.1}
  #allocation0 [shape = 'u32[]', space=smem, size = 0x4, offset = 0x4, fixed_abs, tag = 'smem constant byte address 0x4 - core index']
  #allocation1 [shape = 'u32[144,128]{1,0:T(1,128)}', space=vmem, size = 0x12000, scoped, tag = 'internal scratch']
  %s0 = inlined_call_operand.hbm [shape: f32[16,16], index: 0, kind: input, shape index: {}]
  %s1 = inlined_call_operand.hbm [shape: f32[16,32], index: 1, kind: input, shape index: {}]
  %s2 = inlined_call_operand.hbm [shape: f32[32,32], index: 2, kind: input, shape index: {}]
  %s3 = inlined_call_operand.vmem [shape: f32[1,32], index: 3, kind: input, shape index: {}]
  %s4 = inlined_call_operand.hbm [shape: f32[32,128], index: 4, kind: input, shape index: {}]
  %s5 = inlined_call_operand.vmem [shape: f32[1,128], index: 5, kind: input, shape index: {}]
  %s6 = inlined_call_operand.hbm [shape: f32[2,128], index: 6, kind: output, shape index: {}]
  %s7 = sld [smem:[#allocation0]]
  $region50: #{tpu_custom_call.1} parent=0
    _
  %s9 = ssub.s32 1, %s7
  %s10 = scalar_select 0, %s9, %s7
  $region1: #{tpu_custom_call.1} parent=0
    #allocation2 [shape = 'u8[8192]{0}', space=vmem, size = 0x2000, scoped, tag = 'input window, operand 0, single buffered']
    #allocation3 [shape = 's32[1]{0}', space=sflag, size = 0x4, scoped, tag = 'scoped memory for tpu_custom_call.1']
    #allocation4 [shape = 's32[1]{0}', space=sflag, size = 0x4, scoped, tag = 'scoped memory for tpu_custom_call.1']
    #allocation5 [shape = 'u8[8192]{0}', space=vmem, size = 0x2000, scoped, tag = 'input window, operand 1, single buffered']
    #allocation6 [shape = 's32[1]{0}', space=sflag, size = 0x4, scoped, tag = 'scoped memory for tpu_custom_call.1']
    #allocation7 [shape = 'u8[16384]{0}', space=vmem, size = 0x4000, scoped, tag = 'input window, operand 2, single buffered']
    #allocation8 [shape = 'u8[16384]{0}', space=vmem, size = 0x4000, scoped, tag = 'input window, operand 4, single buffered']
    #allocation9 [shape = 's32[1]{0}', space=sflag, size = 0x4, scoped, tag = 'scoped memory for tpu_custom_call.1']
    #allocation10 [shape = 'u8[1024]{0}', space=vmem, size = 0x400, scoped, tag = 'output window, operand 0, single buffered']
    %11 = vsyncpa [#allocation3], 0
    %12 = vsyncpa [#allocation6], 0
    %13 = vsyncpa [#allocation9], 0
    %14 = vsyncpa [#allocation4], 0
    // Predicated region
    $region2: #{tpu_custom_call.1} parent=1 // pred_check
      _
    $region3: #{tpu_custom_call.1} parent=1 // pred_check_branch
      %16 = sbr.rel (0) target = $region5
    $region4: #{tpu_custom_call.1} parent=1 // pred_region
      %s18 = ssub.s32 256, 256
      %19 = vsyncadd [#allocation3], %s18
      %s20 = sshll.u32 [#allocation2], 4
      %s21 = int_to_ptr.vmem [resolvable:$true] %s20
      %26 = dma.hbm_to_vmem [thread:$0]  %s0, 256, %s21, [#allocation3], 128, 128, 8
    $region5: #{tpu_custom_call.1} parent=1 // pred_fallthru
      _
    // Predicated region
    $region6: #{tpu_custom_call.1} parent=1 // pred_check
      _
    $region7: #{tpu_custom_call.1} parent=1 // pred_check_branch
      %28 = sbr.rel (0) target = $region9
    $region8: #{tpu_custom_call.1} parent=1 // pred_region
      %s30 = ssub.s32 256, 256
      %31 = vsyncadd [#allocation6], %s30
      %s32 = sshll.u32 [#allocation5], 4
      %s33 = int_to_ptr.vmem [resolvable:$true] %s32
      %38 = dma.hbm_to_vmem [thread:$0]  %s1, 256, %s33, [#allocation6], 128, 128, 8
    $region9: #{tpu_custom_call.1} parent=1 // pred_fallthru
      _
    // Predicated region
    $region10: #{tpu_custom_call.1} parent=1 // pred_check
      _
    $region11: #{tpu_custom_call.1} parent=1 // pred_check_branch
      %40 = sbr.rel (0) target = $region13
    $region12: #{tpu_custom_call.1} parent=1 // pred_region
      %s42 = ssub.s32 512, 512
      %43 = vsyncadd [#allocation6], %s42
      %s44 = sshll.u32 [#allocation7], 4
      %s45 = int_to_ptr.vmem [resolvable:$true] %s44
      %50 = dma.hbm_to_vmem [thread:$0]  %s2, 512, %s45, [#allocation6], 128, 128, 8
    $region13: #{tpu_custom_call.1} parent=1 // pred_fallthru
      _
    // Predicated region
    $region14: #{tpu_custom_call.1} parent=1 // pred_check
      _
    $region15: #{tpu_custom_call.1} parent=1 // pred_check_branch
      %52 = sbr.rel (0) target = $region17
    $region16: #{tpu_custom_call.1} parent=1 // pred_region
      _
    $region17: #{tpu_custom_call.1} parent=1 // pred_fallthru
      _
    // Predicated region
    $region18: #{tpu_custom_call.1} parent=1 // pred_check
      _
    $region19: #{tpu_custom_call.1} parent=1 // pred_check_branch
      %54 = sbr.rel (0) target = $region21
    $region20: #{tpu_custom_call.1} parent=1 // pred_region
      %s56 = ssub.s32 512, 512
      %57 = vsyncadd [#allocation9], %s56
      %s58 = sshll.u32 [#allocation8], 4
      %s59 = int_to_ptr.vmem [resolvable:$true] %s58
      %64 = dma.hbm_to_vmem [thread:$0]  %s4, 512, %s59, [#allocation9], 128, 128, 8
    $region21: #{tpu_custom_call.1} parent=1 // pred_fallthru
      _
    // Predicated region
    $region22: #{tpu_custom_call.1} parent=1 // pred_check
      _
    $region23: #{tpu_custom_call.1} parent=1 // pred_check_branch
      %66 = sbr.rel (0) target = $region25
    $region24: #{tpu_custom_call.1} parent=1 // pred_region
      _
    $region25: #{tpu_custom_call.1} parent=1 // pred_fallthru
      _
    // Predicated region
    $region26: #{tpu_custom_call.1} parent=1 // pred_check
      _
    $region27: #{tpu_custom_call.1} parent=1 // pred_check_branch
      %68 = sbr.rel (0) target = $region29
    $region28: #{tpu_custom_call.1} parent=1 // pred_region
      %69 = dma.done [#allocation3], 256
    $region29: #{tpu_custom_call.1} parent=1 // pred_fallthru
      _
    // Predicated region
    $region30: #{tpu_custom_call.1} parent=1 // pred_check
      _
    $region31: #{tpu_custom_call.1} parent=1 // pred_check_branch
      %71 = sbr.rel (0) target = $region33
    $region32: #{tpu_custom_call.1} parent=1 // pred_region
      %72 = dma.done [#allocation6], 256
    $region33: #{tpu_custom_call.1} parent=1 // pred_fallthru
      _
    // Predicated region
    $region34: #{tpu_custom_call.1} parent=1 // pred_check
      _
    $region35: #{tpu_custom_call.1} parent=1 // pred_check_branch
      %74 = sbr.rel (0) target = $region37
    $region36: #{tpu_custom_call.1} parent=1 // pred_region
      %75 = dma.done [#allocation6], 512
    $region37: #{tpu_custom_call.1} parent=1 // pred_fallthru
      _
    // Predicated region
    $region38: #{tpu_custom_call.1} parent=1 // pred_check
      _
    $region39: #{tpu_custom_call.1} parent=1 // pred_check_branch
      %77 = sbr.rel (0) target = $region41
    $region40: #{tpu_custom_call.1} parent=1 // pred_region
      %78 = dma.done [#allocation9], 512
    $region41: #{tpu_custom_call.1} parent=1 // pred_fallthru
      _
    %v79 = vld [vmem:[#allocation2] sm:$0xff]
    %v80 = vld [vmem:[#allocation2 + $0x8] sm:$0xff]
    %v81 = vld [vmem:[#allocation5] sm:$0xff]
    %v82 = vld [vmem:[#allocation5 + $0x8] sm:$0xff]
    %v83 = vld [vmem:[%s3] sm:$0x1]
    %v85 = vlaneseq
    %v86 = vshrl.u32 %v85, 7
    %v87 = vsub.s32 0, %v86
    %v88 = vrot.slane %v83, %v87
    %vm90 = vcmask 130048
    %v92 = vsel %vm90, %v79, 0
    %v95 = vsel %vm90, %v80, 0
    %97 = vmatprep.subr.mxu0 0.0
    %98 = vmatpush1.msra.mxu0 %v81
    %99 = vmatprep.subr.mxu0 0.0
    %100 = vmatpush1.msra.mxu0 %v82
    %101 = vmatprep.subr.mxu0 0.0
    %102 = vmatpush1.msra.mxu0 0.0
    %103 = vmatprep.subr.mxu0 0.0
    %104 = vmatpush1.msra.mxu0 0.0
    %105 = vmatprep.subr.mxu0 0.0
    %106 = vmatpush1.msra.mxu0 0.0
    %107 = vmatprep.subr.mxu0 0.0
    %108 = vmatpush1.msra.mxu0 0.0
    %109 = vmatprep.subr.mxu0 0.0
    %110 = vmatpush1.msra.mxu0 0.0
    %111 = vmatprep.subr.mxu0 0.0
    %112 = vmatpush1.msra.mxu0 0.0
    %113 = vmatprep.subr.mxu0 0.0
    %114 = vmatpush1.msra.mxu0 0.0
    %115 = vmatprep.subr.mxu0 0.0
    %116 = vmatpush1.msra.mxu0 0.0
    %117 = vmatprep.subr.mxu0 0.0
    %118 = vmatpush1.msra.mxu0 0.0
    %119 = vmatprep.subr.mxu0 0.0
    %120 = vmatpush1.msra.mxu0 0.0
    %121 = vmatprep.subr.mxu0 0.0
    %122 = vmatpush1.msra.mxu0 0.0
    %123 = vmatprep.subr.mxu0 0.0
    %124 = vmatpush1.msra.mxu0 0.0
    %125 = vmatprep.subr.mxu0 0.0
    %126 = vmatpush1.msra.mxu0 0.0
    %127 = vmatprep.subr.mxu0 0.0
    %128 = vmatpush1.msra.mxu0 0.0
    %129 = vmatprep.subr.mxu0 0.0
    %130 = vmatpush1.msra.mxu0 0.0
    %131 = vmatprep.subr.mxu0 0.0
    %132 = vmatpush1.msra.mxu0 0.0
    %133 = vmatprep.subr.mxu0 0.0
    %134 = vmatpush1.msra.mxu0 0.0
    %135 = vmatprep.subr.mxu0 0.0
    %136 = vmatpush1.msra.mxu0 0.0
    %137 = vmatprep.subr.mxu0 0.0
    %138 = vmatpush1.msra.mxu0 0.0
    %139 = vmatprep.subr.mxu0 0.0
    %140 = vmatpush1.msra.mxu0 0.0
    %141 = vmatprep.subr.mxu0 0.0
    %142 = vmatpush1.msra.mxu0 0.0
    %143 = vmatprep.subr.mxu0 0.0
    %144 = vmatpush1.msra.mxu0 0.0
    %145 = vmatprep.subr.mxu0 0.0
    %146 = vmatpush1.msra.mxu0 0.0
    %147 = vmatprep.subr.mxu0 0.0
    %148 = vmatpush1.msra.mxu0 0.0
    %149 = vmatprep.subr.mxu0 0.0
    %150 = vmatpush1.msra.mxu0 0.0
    %151 = vmatprep.subr.mxu0 0.0
    %152 = vmatpush1.msra.mxu0 0.0
    %153 = vmatprep.subr.mxu0 0.0
    %154 = vmatpush1.msra.mxu0 0.0
    %155 = vmatprep.subr.mxu0 0.0
    %156 = vmatpush1.msra.mxu0 0.0
    %157 = vmatprep.subr.mxu0 0.0
    %158 = vmatpush1.msra.mxu0 0.0
    %159 = vmatprep.subr.mxu0 0.0
    %160 = vmatpush1.msra.mxu0 0.0
    %161 = vmatprep.mubr.f32.mxu0 0.0
    %162 = vmatmul.mubr.f32.gmra.mrb[0].mxu0 %v92
    %v163 = vpop.f32.mrb[0].mxu0
    %v164 = vadd.f32 %v88, %v163
    %v165 = vpop.f32.mrb[0].mxu0
    %166 = vmatprep.mubr.f32.mxu0 0.0
    %167 = vmatmul.mubr.f32.gmra.mrb[0].mxu0 %v95
    %v168 = vpop.f32.mrb[0].mxu0
    %v169 = vadd.f32 %v88, %v168
    %v170 = vpop.f32.mrb[0].mxu0
    %171 = vdwg.mxu0
    %v172 = vld [vmem:[#allocation7] sm:$0xff]
    %v173 = vld [vmem:[#allocation7 + $0x8] sm:$0xff]
    %v174 = vld [vmem:[#allocation7 + $0x10] sm:$0xff]
    %v175 = vld [vmem:[#allocation7 + $0x18] sm:$0xff]
    %v176 = vtanh.pop %v164
    %vm177 = vcmask 261120
    %v179 = vsel %vm177, %v176, 0
    %181 = vmatprep.subr.mxu0 0.0
    %182 = vmatpush1.msra.mxu0 %v172
    %183 = vmatprep.subr.mxu0 0.0
    %184 = vmatpush1.msra.mxu0 %v173
    %185 = vmatprep.subr.mxu0 0.0
    %186 = vmatpush1.msra.mxu0 %v174
    %187 = vmatprep.subr.mxu0 0.0
    %188 = vmatpush1.msra.mxu0 %v175
    %189 = vmatprep.subr.mxu0 0.0
    %190 = vmatpush1.msra.mxu0 0.0
    %191 = vmatprep.subr.mxu0 0.0
    %192 = vmatpush1.msra.mxu0 0.0
    %193 = vmatprep.subr.mxu0 0.0
    %194 = vmatpush1.msra.mxu0 0.0
    %195 = vmatprep.subr.mxu0 0.0
    %196 = vmatpush1.msra.mxu0 0.0
    %197 = vmatprep.subr.mxu0 0.0
    %198 = vmatpush1.msra.mxu0 0.0
    %199 = vmatprep.subr.mxu0 0.0
    %200 = vmatpush1.msra.mxu0 0.0
    %201 = vmatprep.subr.mxu0 0.0
    %202 = vmatpush1.msra.mxu0 0.0
    %203 = vmatprep.subr.mxu0 0.0
    %204 = vmatpush1.msra.mxu0 0.0
    %205 = vmatprep.subr.mxu0 0.0
    %206 = vmatpush1.msra.mxu0 0.0
    %207 = vmatprep.subr.mxu0 0.0
    %208 = vmatpush1.msra.mxu0 0.0
    %209 = vmatprep.subr.mxu0 0.0
    %210 = vmatpush1.msra.mxu0 0.0
    %211 = vmatprep.subr.mxu0 0.0
    %212 = vmatpush1.msra.mxu0 0.0
    %213 = vmatprep.subr.mxu0 0.0
    %214 = vmatpush1.msra.mxu0 0.0
    %215 = vmatprep.subr.mxu0 0.0
    %216 = vmatpush1.msra.mxu0 0.0
    %217 = vmatprep.subr.mxu0 0.0
    %218 = vmatpush1.msra.mxu0 0.0
    %219 = vmatprep.subr.mxu0 0.0
    %220 = vmatpush1.msra.mxu0 0.0
    %221 = vmatprep.subr.mxu0 0.0
    %222 = vmatpush1.msra.mxu0 0.0
    %223 = vmatprep.subr.mxu0 0.0
    %224 = vmatpush1.msra.mxu0 0.0
    %225 = vmatprep.subr.mxu0 0.0
    %226 = vmatpush1.msra.mxu0 0.0
    %227 = vmatprep.subr.mxu0 0.0
    %228 = vmatpush1.msra.mxu0 0.0
    %229 = vmatprep.subr.mxu0 0.0
    %230 = vmatpush1.msra.mxu0 0.0
    %231 = vmatprep.subr.mxu0 0.0
    %232 = vmatpush1.msra.mxu0 0.0
    %233 = vmatprep.subr.mxu0 0.0
    %234 = vmatpush1.msra.mxu0 0.0
    %235 = vmatprep.subr.mxu0 0.0
    %236 = vmatpush1.msra.mxu0 0.0
    %237 = vmatprep.subr.mxu0 0.0
    %238 = vmatpush1.msra.mxu0 0.0
    %239 = vmatprep.subr.mxu0 0.0
    %240 = vmatpush1.msra.mxu0 0.0
    %241 = vmatprep.subr.mxu0 0.0
    %242 = vmatpush1.msra.mxu0 0.0
    %243 = vmatprep.subr.mxu0 0.0
    %244 = vmatpush1.msra.mxu0 0.0
    %245 = vmatprep.mubr.f32.mxu0 0.0
    %246 = vmatmul.mubr.f32.gmra.mrb[0].mxu0 %v179
    %v247 = vpop.f32.mrb[0].mxu0
    %v248 = vadd.f32 0.0, %v247
    %v249 = vpop.f32.mrb[0].mxu0
    %250 = vdwg.mxu0
    %v252 = vrot.slane %v248, 6
    %v254 = vadd.f32 %v164, %v252
    %v255 = vtanh.pop %v254
    %v257 = vrot.slane %v255, 2
    %v259 = vadd.f32 %v176, %v257
    %v260 = vsel %vm177, %v257, 0
    %262 = vmatprep.subr.mxu0 0.0
    %263 = vmatpush1.msra.mxu0 %v172
    %264 = vmatprep.subr.mxu0 0.0
    %265 = vmatpush1.msra.mxu0 %v173
    %266 = vmatprep.subr.mxu0 0.0
    %267 = vmatpush1.msra.mxu0 %v174
    %268 = vmatprep.subr.mxu0 0.0
    %269 = vmatpush1.msra.mxu0 %v175
    %270 = vmatprep.subr.mxu0 0.0
    %271 = vmatpush1.msra.mxu0 0.0
    %272 = vmatprep.subr.mxu0 0.0
    %273 = vmatpush1.msra.mxu0 0.0
    %274 = vmatprep.subr.mxu0 0.0
    %275 = vmatpush1.msra.mxu0 0.0
    %276 = vmatprep.subr.mxu0 0.0
    %277 = vmatpush1.msra.mxu0 0.0
    %278 = vmatprep.subr.mxu0 0.0
    %279 = vmatpush1.msra.mxu0 0.0
    %280 = vmatprep.subr.mxu0 0.0
    %281 = vmatpush1.msra.mxu0 0.0
    %282 = vmatprep.subr.mxu0 0.0
    %283 = vmatpush1.msra.mxu0 0.0
    %284 = vmatprep.subr.mxu0 0.0
    %285 = vmatpush1.msra.mxu0 0.0
    %286 = vmatprep.subr.mxu0 0.0
    %287 = vmatpush1.msra.mxu0 0.0
    %288 = vmatprep.subr.mxu0 0.0
    %289 = vmatpush1.msra.mxu0 0.0
    %290 = vmatprep.subr.mxu0 0.0
    %291 = vmatpush1.msra.mxu0 0.0
    %292 = vmatprep.subr.mxu0 0.0
    %293 = vmatpush1.msra.mxu0 0.0
    %294 = vmatprep.subr.mxu0 0.0
    %295 = vmatpush1.msra.mxu0 0.0
    %296 = vmatprep.subr.mxu0 0.0
    %297 = vmatpush1.msra.mxu0 0.0
    %298 = vmatprep.subr.mxu0 0.0
    %299 = vmatpush1.msra.mxu0 0.0
    %300 = vmatprep.subr.mxu0 0.0
    %301 = vmatpush1.msra.mxu0 0.0
    %302 = vmatprep.subr.mxu0 0.0
    %303 = vmatpush1.msra.mxu0 0.0
    %304 = vmatprep.subr.mxu0 0.0
    %305 = vmatpush1.msra.mxu0 0.0
    %306 = vmatprep.subr.mxu0 0.0
    %307 = vmatpush1.msra.mxu0 0.0
    %308 = vmatprep.subr.mxu0 0.0
    %309 = vmatpush1.msra.mxu0 0.0
    %310 = vmatprep.subr.mxu0 0.0
    %311 = vmatpush1.msra.mxu0 0.0
    %312 = vmatprep.subr.mxu0 0.0
    %313 = vmatpush1.msra.mxu0 0.0
    %314 = vmatprep.subr.mxu0 0.0
    %315 = vmatpush1.msra.mxu0 0.0
    %316 = vmatprep.subr.mxu0 0.0
    %317 = vmatpush1.msra.mxu0 0.0
    %318 = vmatprep.subr.mxu0 0.0
    %319 = vmatpush1.msra.mxu0 0.0
    %320 = vmatprep.subr.mxu0 0.0
    %321 = vmatpush1.msra.mxu0 0.0
    %322 = vmatprep.subr.mxu0 0.0
    %323 = vmatpush1.msra.mxu0 0.0
    %324 = vmatprep.subr.mxu0 0.0
    %325 = vmatpush1.msra.mxu0 0.0
    %326 = vmatprep.mubr.f32.mxu0 0.0
    %327 = vmatmul.mubr.f32.gmra.mrb[0].mxu0 %v260
    %v328 = vpop.f32.mrb[0].mxu0
    %v329 = vadd.f32 0.0, %v328
    %v330 = vpop.f32.mrb[0].mxu0
    %331 = vdwg.mxu0
    %v333 = vrot.slane %v329, 4
    %v335 = vadd.f32 %v164, %v333
    %v336 = vtanh.pop %v335
    %v338 = vrot.slane %v336, 4
    %v340 = vadd.f32 %v259, %v338
    %v341 = vsel %vm177, %v338, 0
    %343 = vmatprep.subr.mxu0 0.0
    %344 = vmatpush1.msra.mxu0 %v172
    %345 = vmatprep.subr.mxu0 0.0
    %346 = vmatpush1.msra.mxu0 %v173
    %347 = vmatprep.subr.mxu0 0.0
    %348 = vmatpush1.msra.mxu0 %v174
    %349 = vmatprep.subr.mxu0 0.0
    %350 = vmatpush1.msra.mxu0 %v175
    %351 = vmatprep.subr.mxu0 0.0
    %352 = vmatpush1.msra.mxu0 0.0
    %353 = vmatprep.subr.mxu0 0.0
    %354 = vmatpush1.msra.mxu0 0.0
    %355 = vmatprep.subr.mxu0 0.0
    %356 = vmatpush1.msra.mxu0 0.0
    %357 = vmatprep.subr.mxu0 0.0
    %358 = vmatpush1.msra.mxu0 0.0
    %359 = vmatprep.subr.mxu0 0.0
    %360 = vmatpush1.msra.mxu0 0.0
    %361 = vmatprep.subr.mxu0 0.0
    %362 = vmatpush1.msra.mxu0 0.0
    %363 = vmatprep.subr.mxu0 0.0
    %364 = vmatpush1.msra.mxu0 0.0
    %365 = vmatprep.subr.mxu0 0.0
    %366 = vmatpush1.msra.mxu0 0.0
    %367 = vmatprep.subr.mxu0 0.0
    %368 = vmatpush1.msra.mxu0 0.0
    %369 = vmatprep.subr.mxu0 0.0
    %370 = vmatpush1.msra.mxu0 0.0
    %371 = vmatprep.subr.mxu0 0.0
    %372 = vmatpush1.msra.mxu0 0.0
    %373 = vmatprep.subr.mxu0 0.0
    %374 = vmatpush1.msra.mxu0 0.0
    %375 = vmatprep.subr.mxu0 0.0
    %376 = vmatpush1.msra.mxu0 0.0
    %377 = vmatprep.subr.mxu0 0.0
    %378 = vmatpush1.msra.mxu0 0.0
    %379 = vmatprep.subr.mxu0 0.0
    %380 = vmatpush1.msra.mxu0 0.0
    %381 = vmatprep.subr.mxu0 0.0
    %382 = vmatpush1.msra.mxu0 0.0
    %383 = vmatprep.subr.mxu0 0.0
    %384 = vmatpush1.msra.mxu0 0.0
    %385 = vmatprep.subr.mxu0 0.0
    %386 = vmatpush1.msra.mxu0 0.0
    %387 = vmatprep.subr.mxu0 0.0
    %388 = vmatpush1.msra.mxu0 0.0
    %389 = vmatprep.subr.mxu0 0.0
    %390 = vmatpush1.msra.mxu0 0.0
    %391 = vmatprep.subr.mxu0 0.0
    %392 = vmatpush1.msra.mxu0 0.0
    %393 = vmatprep.subr.mxu0 0.0
    %394 = vmatpush1.msra.mxu0 0.0
    %395 = vmatprep.subr.mxu0 0.0
    %396 = vmatpush1.msra.mxu0 0.0
    %397 = vmatprep.subr.mxu0 0.0
    %398 = vmatpush1.msra.mxu0 0.0
    %399 = vmatprep.subr.mxu0 0.0
    %400 = vmatpush1.msra.mxu0 0.0
    %401 = vmatprep.subr.mxu0 0.0
    %402 = vmatpush1.msra.mxu0 0.0
    %403 = vmatprep.subr.mxu0 0.0
    %404 = vmatpush1.msra.mxu0 0.0
    %405 = vmatprep.subr.mxu0 0.0
    %406 = vmatpush1.msra.mxu0 0.0
    %407 = vmatprep.mubr.f32.mxu0 0.0
    %408 = vmatmul.mubr.f32.gmra.mrb[0].mxu0 %v341
    %v409 = vpop.f32.mrb[0].mxu0
    %v410 = vadd.f32 0.0, %v409
    %v411 = vpop.f32.mrb[0].mxu0
    %412 = vdwg.mxu0
    %v414 = vrot.slane %v410, 2
    %v416 = vadd.f32 %v164, %v414
    %v417 = vtanh.pop %v416
    %v419 = vrot.slane %v417, 6
    %v421 = vadd.f32 %v340, %v419
    %v422 = vsel %vm177, %v419, 0
    %424 = vmatprep.subr.mxu0 0.0
    %425 = vmatpush1.msra.mxu0 %v172
    %426 = vmatprep.subr.mxu0 0.0
    %427 = vmatpush1.msra.mxu0 %v173
    %428 = vmatprep.subr.mxu0 0.0
    %429 = vmatpush1.msra.mxu0 %v174
    %430 = vmatprep.subr.mxu0 0.0
    %431 = vmatpush1.msra.mxu0 %v175
    %432 = vmatprep.subr.mxu0 0.0
    %433 = vmatpush1.msra.mxu0 0.0
    %434 = vmatprep.subr.mxu0 0.0
    %435 = vmatpush1.msra.mxu0 0.0
    %436 = vmatprep.subr.mxu0 0.0
    %437 = vmatpush1.msra.mxu0 0.0
    %438 = vmatprep.subr.mxu0 0.0
    %439 = vmatpush1.msra.mxu0 0.0
    %440 = vmatprep.subr.mxu0 0.0
    %441 = vmatpush1.msra.mxu0 0.0
    %442 = vmatprep.subr.mxu0 0.0
    %443 = vmatpush1.msra.mxu0 0.0
    %444 = vmatprep.subr.mxu0 0.0
    %445 = vmatpush1.msra.mxu0 0.0
    %446 = vmatprep.subr.mxu0 0.0
    %447 = vmatpush1.msra.mxu0 0.0
    %448 = vmatprep.subr.mxu0 0.0
    %449 = vmatpush1.msra.mxu0 0.0
    %450 = vmatprep.subr.mxu0 0.0
    %451 = vmatpush1.msra.mxu0 0.0
    %452 = vmatprep.subr.mxu0 0.0
    %453 = vmatpush1.msra.mxu0 0.0
    %454 = vmatprep.subr.mxu0 0.0
    %455 = vmatpush1.msra.mxu0 0.0
    %456 = vmatprep.subr.mxu0 0.0
    %457 = vmatpush1.msra.mxu0 0.0
    %458 = vmatprep.subr.mxu0 0.0
    %459 = vmatpush1.msra.mxu0 0.0
    %460 = vmatprep.subr.mxu0 0.0
    %461 = vmatpush1.msra.mxu0 0.0
    %462 = vmatprep.subr.mxu0 0.0
    %463 = vmatpush1.msra.mxu0 0.0
    %464 = vmatprep.subr.mxu0 0.0
    %465 = vmatpush1.msra.mxu0 0.0
    %466 = vmatprep.subr.mxu0 0.0
    %467 = vmatpush1.msra.mxu0 0.0
    %468 = vmatprep.subr.mxu0 0.0
    %469 = vmatpush1.msra.mxu0 0.0
    %470 = vmatprep.subr.mxu0 0.0
    %471 = vmatpush1.msra.mxu0 0.0
    %472 = vmatprep.subr.mxu0 0.0
    %473 = vmatpush1.msra.mxu0 0.0
    %474 = vmatprep.subr.mxu0 0.0
    %475 = vmatpush1.msra.mxu0 0.0
    %476 = vmatprep.subr.mxu0 0.0
    %477 = vmatpush1.msra.mxu0 0.0
    %478 = vmatprep.subr.mxu0 0.0
    %479 = vmatpush1.msra.mxu0 0.0
    %480 = vmatprep.subr.mxu0 0.0
    %481 = vmatpush1.msra.mxu0 0.0
    %482 = vmatprep.subr.mxu0 0.0
    %483 = vmatpush1.msra.mxu0 0.0
    %484 = vmatprep.subr.mxu0 0.0
    %485 = vmatpush1.msra.mxu0 0.0
    %486 = vmatprep.subr.mxu0 0.0
    %487 = vmatpush1.msra.mxu0 0.0
    %488 = vmatprep.mubr.f32.mxu0 0.0
    %489 = vmatmul.mubr.f32.gmra.mrb[0].mxu0 %v422
    %v490 = vpop.f32.mrb[0].mxu0
    %v491 = vadd.f32 0.0, %v490
    %v492 = vpop.f32.mrb[0].mxu0
    %493 = vdwg.mxu0
    %v494 = vadd.f32 %v169, %v491
    %v495 = vtanh.pop %v494
    %v496 = vadd.f32 %v421, %v495
    %v498 = vsel %vm177, %v495, 0
    %500 = vmatprep.subr.mxu0 0.0
    %501 = vmatpush1.msra.mxu0 %v172
    %502 = vmatprep.subr.mxu0 0.0
    %503 = vmatpush1.msra.mxu0 %v173
    %504 = vmatprep.subr.mxu0 0.0
    %505 = vmatpush1.msra.mxu0 %v174
    %506 = vmatprep.subr.mxu0 0.0
    %507 = vmatpush1.msra.mxu0 %v175
    %508 = vmatprep.subr.mxu0 0.0
    %509 = vmatpush1.msra.mxu0 0.0
    %510 = vmatprep.subr.mxu0 0.0
    %511 = vmatpush1.msra.mxu0 0.0
    %512 = vmatprep.subr.mxu0 0.0
    %513 = vmatpush1.msra.mxu0 0.0
    %514 = vmatprep.subr.mxu0 0.0
    %515 = vmatpush1.msra.mxu0 0.0
    %516 = vmatprep.subr.mxu0 0.0
    %517 = vmatpush1.msra.mxu0 0.0
    %518 = vmatprep.subr.mxu0 0.0
    %519 = vmatpush1.msra.mxu0 0.0
    %520 = vmatprep.subr.mxu0 0.0
    %521 = vmatpush1.msra.mxu0 0.0
    %522 = vmatprep.subr.mxu0 0.0
    %523 = vmatpush1.msra.mxu0 0.0
    %524 = vmatprep.subr.mxu0 0.0
    %525 = vmatpush1.msra.mxu0 0.0
    %526 = vmatprep.subr.mxu0 0.0
    %527 = vmatpush1.msra.mxu0 0.0
    %528 = vmatprep.subr.mxu0 0.0
    %529 = vmatpush1.msra.mxu0 0.0
    %530 = vmatprep.subr.mxu0 0.0
    %531 = vmatpush1.msra.mxu0 0.0
    %532 = vmatprep.subr.mxu0 0.0
    %533 = vmatpush1.msra.mxu0 0.0
    %534 = vmatprep.subr.mxu0 0.0
    %535 = vmatpush1.msra.mxu0 0.0
    %536 = vmatprep.subr.mxu0 0.0
    %537 = vmatpush1.msra.mxu0 0.0
    %538 = vmatprep.subr.mxu0 0.0
    %539 = vmatpush1.msra.mxu0 0.0
    %540 = vmatprep.subr.mxu0 0.0
    %541 = vmatpush1.msra.mxu0 0.0
    %542 = vmatprep.subr.mxu0 0.0
    %543 = vmatpush1.msra.mxu0 0.0
    %544 = vmatprep.subr.mxu0 0.0
    %545 = vmatpush1.msra.mxu0 0.0
    %546 = vmatprep.subr.mxu0 0.0
    %547 = vmatpush1.msra.mxu0 0.0
    %548 = vmatprep.subr.mxu0 0.0
    %549 = vmatpush1.msra.mxu0 0.0
    %550 = vmatprep.subr.mxu0 0.0
    %551 = vmatpush1.msra.mxu0 0.0
    %552 = vmatprep.subr.mxu0 0.0
    %553 = vmatpush1.msra.mxu0 0.0
    %554 = vmatprep.subr.mxu0 0.0
    %555 = vmatpush1.msra.mxu0 0.0
    %556 = vmatprep.subr.mxu0 0.0
    %557 = vmatpush1.msra.mxu0 0.0
    %558 = vmatprep.subr.mxu0 0.0
    %559 = vmatpush1.msra.mxu0 0.0
    %560 = vmatprep.subr.mxu0 0.0
    %561 = vmatpush1.msra.mxu0 0.0
    %562 = vmatprep.subr.mxu0 0.0
    %563 = vmatpush1.msra.mxu0 0.0
    %564 = vmatprep.mubr.f32.mxu0 0.0
    %565 = vmatmul.mubr.f32.gmra.mrb[0].mxu0 %v498
    %v566 = vpop.f32.mrb[0].mxu0
    %v567 = vadd.f32 0.0, %v566
    %v568 = vpop.f32.mrb[0].mxu0
    %569 = vdwg.mxu0
    %v571 = vrot.slane %v567, 6
    %v573 = vadd.f32 %v169, %v571
    %v574 = vtanh.pop %v573
    %v576 = vrot.slane %v574, 2
    %v578 = vadd.f32 %v496, %v576
    %v579 = vsel %vm177, %v576, 0
    %581 = vmatprep.subr.mxu0 0.0
    %582 = vmatpush1.msra.mxu0 %v172
    %583 = vmatprep.subr.mxu0 0.0
    %584 = vmatpush1.msra.mxu0 %v173
    %585 = vmatprep.subr.mxu0 0.0
    %586 = vmatpush1.msra.mxu0 %v174
    %587 = vmatprep.subr.mxu0 0.0
    %588 = vmatpush1.msra.mxu0 %v175
    %589 = vmatprep.subr.mxu0 0.0
    %590 = vmatpush1.msra.mxu0 0.0
    %591 = vmatprep.subr.mxu0 0.0
    %592 = vmatpush1.msra.mxu0 0.0
    %593 = vmatprep.subr.mxu0 0.0
    %594 = vmatpush1.msra.mxu0 0.0
    %595 = vmatprep.subr.mxu0 0.0
    %596 = vmatpush1.msra.mxu0 0.0
    %597 = vmatprep.subr.mxu0 0.0
    %598 = vmatpush1.msra.mxu0 0.0
    %599 = vmatprep.subr.mxu0 0.0
    %600 = vmatpush1.msra.mxu0 0.0
    %601 = vmatprep.subr.mxu0 0.0
    %602 = vmatpush1.msra.mxu0 0.0
    %603 = vmatprep.subr.mxu0 0.0
    %604 = vmatpush1.msra.mxu0 0.0
    %605 = vmatprep.subr.mxu0 0.0
    %606 = vmatpush1.msra.mxu0 0.0
    %607 = vmatprep.subr.mxu0 0.0
    %608 = vmatpush1.msra.mxu0 0.0
    %609 = vmatprep.subr.mxu0 0.0
    %610 = vmatpush1.msra.mxu0 0.0
    %611 = vmatprep.subr.mxu0 0.0
    %612 = vmatpush1.msra.mxu0 0.0
    %613 = vmatprep.subr.mxu0 0.0
    %614 = vmatpush1.msra.mxu0 0.0
    %615 = vmatprep.subr.mxu0 0.0
    %616 = vmatpush1.msra.mxu0 0.0
    %617 = vmatprep.subr.mxu0 0.0
    %618 = vmatpush1.msra.mxu0 0.0
    %619 = vmatprep.subr.mxu0 0.0
    %620 = vmatpush1.msra.mxu0 0.0
    %621 = vmatprep.subr.mxu0 0.0
    %622 = vmatpush1.msra.mxu0 0.0
    %623 = vmatprep.subr.mxu0 0.0
    %624 = vmatpush1.msra.mxu0 0.0
    %625 = vmatprep.subr.mxu0 0.0
    %626 = vmatpush1.msra.mxu0 0.0
    %627 = vmatprep.subr.mxu0 0.0
    %628 = vmatpush1.msra.mxu0 0.0
    %629 = vmatprep.subr.mxu0 0.0
    %630 = vmatpush1.msra.mxu0 0.0
    %631 = vmatprep.subr.mxu0 0.0
    %632 = vmatpush1.msra.mxu0 0.0
    %633 = vmatprep.subr.mxu0 0.0
    %634 = vmatpush1.msra.mxu0 0.0
    %635 = vmatprep.subr.mxu0 0.0
    %636 = vmatpush1.msra.mxu0 0.0
    %637 = vmatprep.subr.mxu0 0.0
    %638 = vmatpush1.msra.mxu0 0.0
    %639 = vmatprep.subr.mxu0 0.0
    %640 = vmatpush1.msra.mxu0 0.0
    %641 = vmatprep.subr.mxu0 0.0
    %642 = vmatpush1.msra.mxu0 0.0
    %643 = vmatprep.subr.mxu0 0.0
    %644 = vmatpush1.msra.mxu0 0.0
    %645 = vmatprep.mubr.f32.mxu0 0.0
    %646 = vmatmul.mubr.f32.gmra.mrb[0].mxu0 %v579
    %v647 = vpop.f32.mrb[0].mxu0
    %v648 = vadd.f32 0.0, %v647
    %v649 = vpop.f32.mrb[0].mxu0
    %650 = vdwg.mxu0
    %v652 = vrot.slane %v648, 4
    %v654 = vadd.f32 %v169, %v652
    %v655 = vtanh.pop %v654
    %v657 = vrot.slane %v655, 4
    %v659 = vadd.f32 %v578, %v657
    %v660 = vsel %vm177, %v657, 0
    %662 = vmatprep.subr.mxu0 0.0
    %663 = vmatpush1.msra.mxu0 %v172
    %664 = vmatprep.subr.mxu0 0.0
    %665 = vmatpush1.msra.mxu0 %v173
    %666 = vmatprep.subr.mxu0 0.0
    %667 = vmatpush1.msra.mxu0 %v174
    %668 = vmatprep.subr.mxu0 0.0
    %669 = vmatpush1.msra.mxu0 %v175
    %670 = vmatprep.subr.mxu0 0.0
    %671 = vmatpush1.msra.mxu0 0.0
    %672 = vmatprep.subr.mxu0 0.0
    %673 = vmatpush1.msra.mxu0 0.0
    %674 = vmatprep.subr.mxu0 0.0
    %675 = vmatpush1.msra.mxu0 0.0
    %676 = vmatprep.subr.mxu0 0.0
    %677 = vmatpush1.msra.mxu0 0.0
    %678 = vmatprep.subr.mxu0 0.0
    %679 = vmatpush1.msra.mxu0 0.0
    %680 = vmatprep.subr.mxu0 0.0
    %681 = vmatpush1.msra.mxu0 0.0
    %682 = vmatprep.subr.mxu0 0.0
    %683 = vmatpush1.msra.mxu0 0.0
    %684 = vmatprep.subr.mxu0 0.0
    %685 = vmatpush1.msra.mxu0 0.0
    %686 = vmatprep.subr.mxu0 0.0
    %687 = vmatpush1.msra.mxu0 0.0
    %688 = vmatprep.subr.mxu0 0.0
    %689 = vmatpush1.msra.mxu0 0.0
    %690 = vmatprep.subr.mxu0 0.0
    %691 = vmatpush1.msra.mxu0 0.0
    %692 = vmatprep.subr.mxu0 0.0
    %693 = vmatpush1.msra.mxu0 0.0
    %694 = vmatprep.subr.mxu0 0.0
    %695 = vmatpush1.msra.mxu0 0.0
    %696 = vmatprep.subr.mxu0 0.0
    %697 = vmatpush1.msra.mxu0 0.0
    %698 = vmatprep.subr.mxu0 0.0
    %699 = vmatpush1.msra.mxu0 0.0
    %700 = vmatprep.subr.mxu0 0.0
    %701 = vmatpush1.msra.mxu0 0.0
    %702 = vmatprep.subr.mxu0 0.0
    %703 = vmatpush1.msra.mxu0 0.0
    %704 = vmatprep.subr.mxu0 0.0
    %705 = vmatpush1.msra.mxu0 0.0
    %706 = vmatprep.subr.mxu0 0.0
    %707 = vmatpush1.msra.mxu0 0.0
    %708 = vmatprep.subr.mxu0 0.0
    %709 = vmatpush1.msra.mxu0 0.0
    %710 = vmatprep.subr.mxu0 0.0
    %711 = vmatpush1.msra.mxu0 0.0
    %712 = vmatprep.subr.mxu0 0.0
    %713 = vmatpush1.msra.mxu0 0.0
    %714 = vmatprep.subr.mxu0 0.0
    %715 = vmatpush1.msra.mxu0 0.0
    %716 = vmatprep.subr.mxu0 0.0
    %717 = vmatpush1.msra.mxu0 0.0
    %718 = vmatprep.subr.mxu0 0.0
    %719 = vmatpush1.msra.mxu0 0.0
    %720 = vmatprep.subr.mxu0 0.0
    %721 = vmatpush1.msra.mxu0 0.0
    %722 = vmatprep.subr.mxu0 0.0
    %723 = vmatpush1.msra.mxu0 0.0
    %724 = vmatprep.subr.mxu0 0.0
    %725 = vmatpush1.msra.mxu0 0.0
    %726 = vmatprep.mubr.f32.mxu0 0.0
    %727 = vmatmul.mubr.f32.gmra.mrb[0].mxu0 %v660
    %v728 = vpop.f32.mrb[0].mxu0
    %v729 = vadd.f32 0.0, %v728
    %v730 = vpop.f32.mrb[0].mxu0
    %731 = vdwg.mxu0
    %v733 = vrot.slane %v729, 2
    %v735 = vadd.f32 %v169, %v733
    %v736 = vtanh.pop %v735
    %v738 = vrot.slane %v736, 6
    %v740 = vadd.f32 %v659, %v738
    %v741 = vld [vmem:[#allocation8] sm:$0xff]
    %v742 = vld [vmem:[#allocation8 + $0x8] sm:$0xff]
    %v743 = vld [vmem:[#allocation8 + $0x10] sm:$0xff]
    %v744 = vld [vmem:[#allocation8 + $0x18] sm:$0xff]
    %v745 = vld [vmem:[%s5] sm:$0x1]
    %v747 = vlaneseq
    %v748 = vshrl.u32 %v747, 7
    %v749 = vsub.s32 0, %v748
    %v750 = vrot.slane %v745, %v749
    %v753 = vsel %vm177, %v740, 0
    %755 = vmatprep.subr.mxu0 0.0
    %756 = vmatpush1.msra.mxu0 %v741
    %757 = vmatprep.subr.mxu0 0.0
    %758 = vmatpush1.msra.mxu0 %v742
    %759 = vmatprep.subr.mxu0 0.0
    %760 = vmatpush1.msra.mxu0 %v743
    %761 = vmatprep.subr.mxu0 0.0
    %762 = vmatpush1.msra.mxu0 %v744
    %763 = vmatprep.subr.mxu0 0.0
    %764 = vmatpush1.msra.mxu0 0.0
    %765 = vmatprep.subr.mxu0 0.0
    %766 = vmatpush1.msra.mxu0 0.0
    %767 = vmatprep.subr.mxu0 0.0
    %768 = vmatpush1.msra.mxu0 0.0
    %769 = vmatprep.subr.mxu0 0.0
    %770 = vmatpush1.msra.mxu0 0.0
    %771 = vmatprep.subr.mxu0 0.0
    %772 = vmatpush1.msra.mxu0 0.0
    %773 = vmatprep.subr.mxu0 0.0
    %774 = vmatpush1.msra.mxu0 0.0
    %775 = vmatprep.subr.mxu0 0.0
    %776 = vmatpush1.msra.mxu0 0.0
    %777 = vmatprep.subr.mxu0 0.0
    %778 = vmatpush1.msra.mxu0 0.0
    %779 = vmatprep.subr.mxu0 0.0
    %780 = vmatpush1.msra.mxu0 0.0
    %781 = vmatprep.subr.mxu0 0.0
    %782 = vmatpush1.msra.mxu0 0.0
    %783 = vmatprep.subr.mxu0 0.0
    %784 = vmatpush1.msra.mxu0 0.0
    %785 = vmatprep.subr.mxu0 0.0
    %786 = vmatpush1.msra.mxu0 0.0
    %787 = vmatprep.subr.mxu0 0.0
    %788 = vmatpush1.msra.mxu0 0.0
    %789 = vmatprep.subr.mxu0 0.0
    %790 = vmatpush1.msra.mxu0 0.0
    %791 = vmatprep.subr.mxu0 0.0
    %792 = vmatpush1.msra.mxu0 0.0
    %793 = vmatprep.subr.mxu0 0.0
    %794 = vmatpush1.msra.mxu0 0.0
    %795 = vmatprep.subr.mxu0 0.0
    %796 = vmatpush1.msra.mxu0 0.0
    %797 = vmatprep.subr.mxu0 0.0
    %798 = vmatpush1.msra.mxu0 0.0
    %799 = vmatprep.subr.mxu0 0.0
    %800 = vmatpush1.msra.mxu0 0.0
    %801 = vmatprep.subr.mxu0 0.0
    %802 = vmatpush1.msra.mxu0 0.0
    %803 = vmatprep.subr.mxu0 0.0
    %804 = vmatpush1.msra.mxu0 0.0
    %805 = vmatprep.subr.mxu0 0.0
    %806 = vmatpush1.msra.mxu0 0.0
    %807 = vmatprep.subr.mxu0 0.0
    %808 = vmatpush1.msra.mxu0 0.0
    %809 = vmatprep.subr.mxu0 0.0
    %810 = vmatpush1.msra.mxu0 0.0
    %811 = vmatprep.subr.mxu0 0.0
    %812 = vmatpush1.msra.mxu0 0.0
    %813 = vmatprep.subr.mxu0 0.0
    %814 = vmatpush1.msra.mxu0 0.0
    %815 = vmatprep.subr.mxu0 0.0
    %816 = vmatpush1.msra.mxu0 0.0
    %817 = vmatprep.subr.mxu0 0.0
    %818 = vmatpush1.msra.mxu0 0.0
    %819 = vmatprep.mubr.f32.mxu0 0.0
    %820 = vmatmul.mubr.f32.gmra.mrb[0].mxu0 %v753
    %v821 = vpop.f32.mrb[0].mxu0
    %v822 = vadd.f32 %v750, %v821
    %v823 = vpop.f32.mrb[0].mxu0
    %824 = vdwg.mxu0
    %vm825 = vcmask 1041408
    %v826 = vsel %vm825, %v822, -inf
    %827 = vmax.xlane.f32.xlu0 %v826
    %v828 = vpop.xlane.xlu0 %827
    %v829 = vsub.f32 %v822, %v828
    %v830 = vmul.f32 %v829, 1.442695
    %v831 = vpow.pop %v830
    %v832 = vsel %vm825, %v831, 0.0
    %833 = vadd.xlane.f32.xlu0 %v832
    %v834 = vpop.xlane.xlu0 %833
    %v835 = vlog2.pop %v834
    %v836 = vmul.f32 %v835, 0.6931472
    %v837 = vsub.f32 %v829, %v836
    %838 = vst [vmem:[#allocation10] sm:$0x3] %v837
    // Predicated region
    $region42: #{tpu_custom_call.1} parent=1 // pred_check
      _
    $region43: #{tpu_custom_call.1} parent=1 // pred_check_branch
      %840 = sbr.rel (0) target = $region45
    $region44: #{tpu_custom_call.1} parent=1 // pred_region
      %s842 = ssub.s32 32, 32
      %843 = vsyncadd [#allocation4], %s842
      %s845 = sshll.u32 [#allocation10], 4
      %s846 = int_to_ptr.vmem [resolvable:$true] %s845
      %848 = dma.vmem_to_hbm [thread:$0]  %s846, 32, %s6, [#allocation4]
    $region45: #{tpu_custom_call.1} parent=1 // pred_fallthru
      _
    // Predicated region
    $region46: #{tpu_custom_call.1} parent=1 // pred_check
      _
    $region47: #{tpu_custom_call.1} parent=1 // pred_check_branch
      %850 = sbr.rel (0) target = $region49
    $region48: #{tpu_custom_call.1} parent=1 // pred_region
      %851 = dma.done [#allocation4], 32
    $region49: #{tpu_custom_call.1} parent=1 // pred_fallthru
      _
    %852 = vsyncpa [#allocation3], 1
    %853 = vsyncpa [#allocation6], 1
    %854 = vsyncpa [#allocation9], 1
    %855 = vsyncpa [#allocation4], 1

</llo_original>
